<compile_context>
chip_gen: v7x
topology: tpu7x:2x2x1
jax: 0.10.0
libtpu: 0.0.40
codegen_flags: <defaults>
</compile_context>

<pallas_src>
import jax
import jax.numpy as jnp
from jax.experimental import pallas as pl
from jax.experimental.pallas import tpu as pltpu

VOCAB = 168   # nn.Embedding(168, embed_dim)
LANES = 128


def _embed_kernel(idx_ref, tbl_t_ref, out_ref):
    """One tile of the embedding lookup as (E, K) @ (K, TILE) on the MXU.

    idx_ref:   (1, 1, TILE) int32   -- TILE ids, lane-resident
    tbl_t_ref: (E, VPAD)    float32 -- transposed, zero-padded embedding table
    out_ref:   (E, TILE)    float32 -- transposed output block (lane-dense)
    """
    idx = idx_ref[0]                                    # (1, TILE), ids on lanes
    vpad = tbl_t_ref.shape[1]
    tile = idx.shape[1]
    # vocab index on sublanes vs. ids on lanes -> one-hot with no cross-lane work
    row = jax.lax.broadcasted_iota(jnp.int32, (vpad, tile), 0)
    one_hot = (row == idx).astype(tbl_t_ref.dtype)      # (VPAD, TILE)
    out_ref[...] = jnp.dot(
        tbl_t_ref[...], one_hot, preferred_element_type=jnp.float32
    )


def biome_id_emb_forward(x, table, *, tile=512):
    """Pallas equivalent of BiomeIDEmb.forward. Returns (embeddings, None).

    NOTE: for very small N a plain XLA gather (table[x]) can be as fast as any
    custom kernel; gate on N in production if that matters.
    """
    orig_shape = x.shape
    idx_flat = x.reshape(-1).astype(jnp.int32)
    n = idx_flat.shape[0]
    n_tiles = pl.cdiv(n, tile)
    n_pad = n_tiles * tile
    # pad with id 0 (a valid row); padded columns are sliced away below
    idx_flat = jnp.pad(idx_flat, (0, n_pad - n))
    idx3d = idx_flat.reshape(n_tiles, 1, tile)           # ids lane-dense per tile

    vocab, embed_dim = table.shape
    # Zero-pad vocab to a multiple of 128 and pre-transpose so the kernel does a
    # plain (E, K) @ (K, TILE) matmul with a clean MXU contraction dim.
    vpad = pl.cdiv(vocab, LANES) * LANES
    table_t = jnp.pad(table, ((0, vpad - vocab), (0, 0))).T   # (E, VPAD) f32

    out_t = pl.pallas_call(
        _embed_kernel,
        out_shape=jax.ShapeDtypeStruct((embed_dim, n_pad), jnp.float32),
        grid_spec=pltpu.PrefetchScalarGridSpec(
            num_scalar_prefetch=0,
            grid=(n_tiles,),
            in_specs=[
                # per-step tile of ids; (1, TILE) minor dims keep ids on lanes
                pl.BlockSpec((1, 1, tile), lambda i: (i, 0, 0)),
                # full table, invariant across the grid (constant index map ->
                # the block is revisited, not re-DMA'd every step)
                pl.BlockSpec((embed_dim, vpad), lambda i: (0, 0)),
            ],
            # transposed output block: TILE on lanes -> full-width stores
            out_specs=pl.BlockSpec((embed_dim, tile), lambda i: (0, i)),
        ),
        compiler_params=pltpu.CompilerParams(
            dimension_semantics=("parallel",),
        ),
    )(idx3d, table_t)

    emb = out_t.T[:n].reshape(orig_shape + (embed_dim,))
    return emb, None


def init_params(embed_dim, key):
    """Deterministic init matching nn.Embedding default: N(0, 1), float32."""
    return jax.random.normal(key, (VOCAB, embed_dim), dtype=jnp.float32)


if __name__ == "__main__":
    embed_dim = 32
    key = jax.random.PRNGKey(0)
    k_tbl, k_idx = jax.random.split(key)

    table = init_params(embed_dim, k_tbl)

    # Biome-ID map: batch=2, 16x16 spatial grid of integer biome ids in [0, 168)
    x = jax.random.randint(k_idx, (2, 16, 16), 0, VOCAB, dtype=jnp.int32)

    emb, aux = biome_id_emb_forward(x, table)
    emb = jax.block_until_ready(emb)

    # sanity check vs plain-JAX gather (reference semantics of nn.Embedding)
    ref = table[x]
    assert emb.shape == x.shape + (embed_dim,)
    assert aux is None
    assert jnp.allclose(emb, ref, atol=1e-6), "mismatch vs reference gather"

    print("KERNEL_OK")
</pallas_src>

<mosaic_0001>
module attributes {stable_mosaic.version = 11 : i64} {
  func.func @_embed_kernel(%arg0: i32, %arg1: memref<1x1x512xi32, #tpu.memory_space<vmem>>, %arg2: memref<32x256xf32, #tpu.memory_space<vmem>>, %arg3: memref<32x512xf32, #tpu.memory_space<vmem>>) attributes {dimension_semantics = [#tpu.dimension_semantics<parallel>], iteration_bounds = array<i64: 1>, scalar_prefetch = 0 : i64, scratch_operands = 0 : i64, tpu.core_type = #tpu.core_type<tc>, window_params = [{transform_indices = @transform_0, window_bounds = array<i64: 1, 1, 512>}, {pipeline_mode = #tpu.pipeline_mode<synchronous>, transform_indices = @transform_1, window_bounds = array<i64: 32, 256>}, {transform_indices = @transform_2, window_bounds = array<i64: 32, 512>}]} {
    %c0 = arith.constant 0 : index
    %c0_0 = arith.constant 0 : index
    %c0_1 = arith.constant 0 : index
    %0 = vector.load %arg1[%c0, %c0_0, %c0_1] : memref<1x1x512xi32, #tpu.memory_space<vmem>>, vector<1x1x512xi32>
    %1 = vector.shape_cast %0 : vector<1x1x512xi32> to vector<1x512xi32>
    %2 = tpu.iota {dimensions = array<i32: 0>} : vector<256x512xi32>
    %3 = vector.broadcast %1 : vector<1x512xi32> to vector<256x512xi32>
    %4 = arith.cmpi eq, %2, %3 : vector<256x512xi32>
    %5 = arith.extui %4 : vector<256x512xi1> to vector<256x512xi32>
    %6 = arith.sitofp %5 : vector<256x512xi32> to vector<256x512xf32>
    %c0_2 = arith.constant 0 : index
    %c0_3 = arith.constant 0 : index
    %7 = vector.load %arg2[%c0_2, %c0_3] : memref<32x256xf32, #tpu.memory_space<vmem>>, vector<32x256xf32>
    %cst = arith.constant dense<0.000000e+00> : vector<32x512xf32>
    %8 = tpu.matmul %7, %6, %cst {dimension_numbers = #tpu.dot_dimension_numbers<[1], [0], [0], [1], [0, 0, 1, 1], [], []>} : vector<32x256xf32>, vector<256x512xf32>, vector<32x512xf32> -> vector<32x512xf32>
    %c0_4 = arith.constant 0 : index
    %c0_5 = arith.constant 0 : index
    %9 = vector.load %arg3[%c0_4, %c0_5] : memref<32x512xf32, #tpu.memory_space<vmem>>, vector<32x512xf32>
    tpu.vector_store %arg3[%c0_4, %c0_5], %8 {strides = array<i32>} : memref<32x512xf32, #tpu.memory_space<vmem>>, vector<32x512xf32>,
    return
  }
  func.func @transform_0(%arg0: i32) -> (i32, i32, i32) {
    %c0_i32 = arith.constant 0 : i32
    %c0_i32_0 = arith.constant 0 : i32
    %c0_i32_1 = arith.constant 0 : i32
    return %arg0, %c0_i32, %c0_i32_0 : i32, i32, i32
  }
  func.func @transform_1(%arg0: i32) -> (i32, i32) {
    %c0_i32 = arith.constant 0 : i32
    %c0_i32_0 = arith.constant 0 : i32
    %c0_i32_1 = arith.constant 0 : i32
    return %c0_i32, %c0_i32_0 : i32, i32
  }
  func.func @transform_2(%arg0: i32) -> (i32, i32) {
    %c0_i32 = arith.constant 0 : i32
    %c0_i32_0 = arith.constant 0 : i32
    return %c0_i32, %arg0 : i32, i32
  }
}

</mosaic_0001>

<llo_original>
// kernel: tpu_custom_call.1
$region0: #{tpu_custom_call.1}
  #allocation0 [shape = 'u32[]', space=smem, size = 0x4, offset = 0x4, fixed_abs, tag = 'smem constant byte address 0x4 - core index']
  #allocation1 [shape = 'u32[144,128]{1,0:T(1,128)}', space=vmem, size = 0x12000, scoped, tag = 'internal scratch']
  %s0 = inlined_call_operand.hbm [shape: s32[1,1,512], index: 0, kind: input, shape index: {}]
  %s1 = inlined_call_operand.hbm [shape: f32[32,256], index: 1, kind: input, shape index: {}]
  %s2 = inlined_call_operand.hbm [shape: f32[32,512], index: 2, kind: output, shape index: {}]
  %s3 = sld [smem:[#allocation0]]
  $region26: #{tpu_custom_call.1} parent=0
    _
  %s5 = ssub.s32 1, %s3
  %s6 = scalar_select 0, %s5, %s3
  $region1: #{tpu_custom_call.1} parent=0
    #allocation2 [shape = 'u8[2048]{0}', space=vmem, size = 0x800, scoped, tag = 'input window, operand 0, single buffered']
    #allocation3 [shape = 's32[1]{0}', space=sflag, size = 0x4, scoped, tag = 'scoped memory for tpu_custom_call.1']
    #allocation4 [shape = 's32[1]{0}', space=sflag, size = 0x4, scoped, tag = 'scoped memory for tpu_custom_call.1']
    #allocation5 [shape = 'u8[32768]{0}', space=vmem, size = 0x8000, scoped, tag = 'input window, operand 1, single buffered']
    #allocation6 [shape = 's32[1]{0}', space=sflag, size = 0x4, scoped, tag = 'scoped memory for tpu_custom_call.1']
    #allocation7 [shape = 'u8[65536]{0}', space=vmem, size = 0x10000, scoped, tag = 'output window, operand 0, single buffered']
    %7 = vsyncpa [#allocation3], 0
    %8 = vsyncpa [#allocation6], 0
    %9 = vsyncpa [#allocation4], 0
    // Predicated region
    $region2: #{tpu_custom_call.1} parent=1 // pred_check
      _
    $region3: #{tpu_custom_call.1} parent=1 // pred_check_branch
      %11 = sbr.rel (0) target = $region5
    $region4: #{tpu_custom_call.1} parent=1 // pred_region
      %s13 = ssub.s32 64, 64
      %14 = vsyncadd [#allocation3], %s13
      %s16 = sshll.u32 [#allocation2], 4
      %s17 = int_to_ptr.vmem [resolvable:$true] %s16
      %19 = dma.hbm_to_vmem [thread:$0]  %s0, 64, %s17, [#allocation3]
    $region5: #{tpu_custom_call.1} parent=1 // pred_fallthru
      _
    // Predicated region
    $region6: #{tpu_custom_call.1} parent=1 // pred_check
      _
    $region7: #{tpu_custom_call.1} parent=1 // pred_check_branch
      %21 = sbr.rel (0) target = $region9
    $region8: #{tpu_custom_call.1} parent=1 // pred_region
      %s23 = ssub.s32 1024, 1024
      %24 = vsyncadd [#allocation6], %s23
      %s25 = sshll.u32 [#allocation5], 4
      %s26 = int_to_ptr.vmem [resolvable:$true] %s25
      %31 = dma.hbm_to_vmem [thread:$0]  %s1, 1024, %s26, [#allocation6], 256, 256, 16
    $region9: #{tpu_custom_call.1} parent=1 // pred_fallthru
      _
    // Predicated region
    $region10: #{tpu_custom_call.1} parent=1 // pred_check
      _
    $region11: #{tpu_custom_call.1} parent=1 // pred_check_branch
      %33 = sbr.rel (0) target = $region13
    $region12: #{tpu_custom_call.1} parent=1 // pred_region
      %34 = dma.done [#allocation3], 64
    $region13: #{tpu_custom_call.1} parent=1 // pred_fallthru
      _
    // Predicated region
    $region14: #{tpu_custom_call.1} parent=1 // pred_check
      _
    $region15: #{tpu_custom_call.1} parent=1 // pred_check_branch
      %36 = sbr.rel (0) target = $region17
    $region16: #{tpu_custom_call.1} parent=1 // pred_region
      %37 = dma.done [#allocation6], 1024
    $region17: #{tpu_custom_call.1} parent=1 // pred_fallthru
      _
    %v38 = vld [vmem:[#allocation2] sm:$0xf]
    %v39 = vlaneseq
    %v40 = vshrl.u32 %v39, 7
    %v41 = vadd.s32 %v40, 8
    %v42 = vadd.s32 %v40, 16
    %v43 = vadd.s32 %v40, 24
    %v44 = vadd.s32 %v40, 32
    %v45 = vadd.s32 %v40, 40
    %v46 = vadd.s32 %v40, 48
    %v47 = vadd.s32 %v40, 56
    %v48 = vadd.s32 %v40, 64
    %v49 = vadd.s32 %v40, 72
    %v50 = vadd.s32 %v40, 80
    %v51 = vadd.s32 %v40, 88
    %v52 = vadd.s32 %v40, 96
    %v53 = vadd.s32 %v40, 104
    %v54 = vadd.s32 %v40, 112
    %v55 = vadd.s32 %v40, 120
    %v56 = vadd.s32 %v40, 128
    %v57 = vadd.s32 %v40, 136
    %v58 = vadd.s32 %v40, 144
    %v59 = vadd.s32 %v40, 152
    %v60 = vadd.s32 %v40, 160
    %v61 = vadd.s32 %v40, 168
    %v62 = vadd.s32 %v40, 176
    %v63 = vadd.s32 %v40, 184
    %v64 = vadd.s32 %v40, 192
    %v65 = vadd.s32 %v40, 200
    %v66 = vadd.s32 %v40, 208
    %v67 = vadd.s32 %v40, 216
    %v68 = vadd.s32 %v40, 224
    %v69 = vadd.s32 %v40, 232
    %v70 = vadd.s32 %v40, 240
    %v71 = vadd.s32 %v40, 248
    %v72 = vlaneseq
    %v73 = vshrl.u32 %v72, 7
    %v74 = vsub.s32 0, %v73
    %v75 = vrot.slane %v38, %v74
    %v76 = vlaneseq
    %v77 = vshrl.u32 %v76, 7
    %v78 = vsub.s32 1, %v77
    %v79 = vrot.slane %v38, %v78
    %v80 = vlaneseq
    %v81 = vshrl.u32 %v80, 7
    %v82 = vsub.s32 2, %v81
    %v83 = vrot.slane %v38, %v82
    %v84 = vlaneseq
    %v85 = vshrl.u32 %v84, 7
    %v86 = vsub.s32 3, %v85
    %v87 = vrot.slane %v38, %v86
    %vm88 = vcmp.eq.s32.totalorder %v40, %v75
    %vm89 = vcmp.eq.s32.totalorder %v40, %v79
    %vm90 = vcmp.eq.s32.totalorder %v40, %v83
    %vm91 = vcmp.eq.s32.totalorder %v40, %v87
    %vm92 = vcmp.eq.s32.totalorder %v41, %v75
    %vm93 = vcmp.eq.s32.totalorder %v41, %v79
    %vm94 = vcmp.eq.s32.totalorder %v41, %v83
    %vm95 = vcmp.eq.s32.totalorder %v41, %v87
    %vm96 = vcmp.eq.s32.totalorder %v42, %v75
    %vm97 = vcmp.eq.s32.totalorder %v42, %v79
    %vm98 = vcmp.eq.s32.totalorder %v42, %v83
    %vm99 = vcmp.eq.s32.totalorder %v42, %v87
    %vm100 = vcmp.eq.s32.totalorder %v43, %v75
    %vm101 = vcmp.eq.s32.totalorder %v43, %v79
    %vm102 = vcmp.eq.s32.totalorder %v43, %v83
    %vm103 = vcmp.eq.s32.totalorder %v43, %v87
    %vm104 = vcmp.eq.s32.totalorder %v44, %v75
    %vm105 = vcmp.eq.s32.totalorder %v44, %v79
    %vm106 = vcmp.eq.s32.totalorder %v44, %v83
    %vm107 = vcmp.eq.s32.totalorder %v44, %v87
    %vm108 = vcmp.eq.s32.totalorder %v45, %v75
    %vm109 = vcmp.eq.s32.totalorder %v45, %v79
    %vm110 = vcmp.eq.s32.totalorder %v45, %v83
    %vm111 = vcmp.eq.s32.totalorder %v45, %v87
    %vm112 = vcmp.eq.s32.totalorder %v46, %v75
    %vm113 = vcmp.eq.s32.totalorder %v46, %v79
    %vm114 = vcmp.eq.s32.totalorder %v46, %v83
    %vm115 = vcmp.eq.s32.totalorder %v46, %v87
    %vm116 = vcmp.eq.s32.totalorder %v47, %v75
    %vm117 = vcmp.eq.s32.totalorder %v47, %v79
    %vm118 = vcmp.eq.s32.totalorder %v47, %v83
    %vm119 = vcmp.eq.s32.totalorder %v47, %v87
    %vm120 = vcmp.eq.s32.totalorder %v48, %v75
    %vm121 = vcmp.eq.s32.totalorder %v48, %v79
    %vm122 = vcmp.eq.s32.totalorder %v48, %v83
    %vm123 = vcmp.eq.s32.totalorder %v48, %v87
    %vm124 = vcmp.eq.s32.totalorder %v49, %v75
    %vm125 = vcmp.eq.s32.totalorder %v49, %v79
    %vm126 = vcmp.eq.s32.totalorder %v49, %v83
    %vm127 = vcmp.eq.s32.totalorder %v49, %v87
    %vm128 = vcmp.eq.s32.totalorder %v50, %v75
    %vm129 = vcmp.eq.s32.totalorder %v50, %v79
    %vm130 = vcmp.eq.s32.totalorder %v50, %v83
    %vm131 = vcmp.eq.s32.totalorder %v50, %v87
    %vm132 = vcmp.eq.s32.totalorder %v51, %v75
    %vm133 = vcmp.eq.s32.totalorder %v51, %v79
    %vm134 = vcmp.eq.s32.totalorder %v51, %v83
    %vm135 = vcmp.eq.s32.totalorder %v51, %v87
    %vm136 = vcmp.eq.s32.totalorder %v52, %v75
    %vm137 = vcmp.eq.s32.totalorder %v52, %v79
    %vm138 = vcmp.eq.s32.totalorder %v52, %v83
    %vm139 = vcmp.eq.s32.totalorder %v52, %v87
    %vm140 = vcmp.eq.s32.totalorder %v53, %v75
    %vm141 = vcmp.eq.s32.totalorder %v53, %v79
    %vm142 = vcmp.eq.s32.totalorder %v53, %v83
    %vm143 = vcmp.eq.s32.totalorder %v53, %v87
    %vm144 = vcmp.eq.s32.totalorder %v54, %v75
    %vm145 = vcmp.eq.s32.totalorder %v54, %v79
    %vm146 = vcmp.eq.s32.totalorder %v54, %v83
    %vm147 = vcmp.eq.s32.totalorder %v54, %v87
    %vm148 = vcmp.eq.s32.totalorder %v55, %v75
    %vm149 = vcmp.eq.s32.totalorder %v55, %v79
    %vm150 = vcmp.eq.s32.totalorder %v55, %v83
    %vm151 = vcmp.eq.s32.totalorder %v55, %v87
    %vm152 = vcmp.eq.s32.totalorder %v56, %v75
    %vm153 = vcmp.eq.s32.totalorder %v56, %v79
    %vm154 = vcmp.eq.s32.totalorder %v56, %v83
    %vm155 = vcmp.eq.s32.totalorder %v56, %v87
    %vm156 = vcmp.eq.s32.totalorder %v57, %v75
    %vm157 = vcmp.eq.s32.totalorder %v57, %v79
    %vm158 = vcmp.eq.s32.totalorder %v57, %v83
    %vm159 = vcmp.eq.s32.totalorder %v57, %v87
    %vm160 = vcmp.eq.s32.totalorder %v58, %v75
    %vm161 = vcmp.eq.s32.totalorder %v58, %v79
    %vm162 = vcmp.eq.s32.totalorder %v58, %v83
    %vm163 = vcmp.eq.s32.totalorder %v58, %v87
    %vm164 = vcmp.eq.s32.totalorder %v59, %v75
    %vm165 = vcmp.eq.s32.totalorder %v59, %v79
    %vm166 = vcmp.eq.s32.totalorder %v59, %v83
    %vm167 = vcmp.eq.s32.totalorder %v59, %v87
    %vm168 = vcmp.eq.s32.totalorder %v60, %v75
    %vm169 = vcmp.eq.s32.totalorder %v60, %v79
    %vm170 = vcmp.eq.s32.totalorder %v60, %v83
    %vm171 = vcmp.eq.s32.totalorder %v60, %v87
    %vm172 = vcmp.eq.s32.totalorder %v61, %v75
    %vm173 = vcmp.eq.s32.totalorder %v61, %v79
    %vm174 = vcmp.eq.s32.totalorder %v61, %v83
    %vm175 = vcmp.eq.s32.totalorder %v61, %v87
    %vm176 = vcmp.eq.s32.totalorder %v62, %v75
    %vm177 = vcmp.eq.s32.totalorder %v62, %v79
    %vm178 = vcmp.eq.s32.totalorder %v62, %v83
    %vm179 = vcmp.eq.s32.totalorder %v62, %v87
    %vm180 = vcmp.eq.s32.totalorder %v63, %v75
    %vm181 = vcmp.eq.s32.totalorder %v63, %v79
    %vm182 = vcmp.eq.s32.totalorder %v63, %v83
    %vm183 = vcmp.eq.s32.totalorder %v63, %v87
    %vm184 = vcmp.eq.s32.totalorder %v64, %v75
    %vm185 = vcmp.eq.s32.totalorder %v64, %v79
    %vm186 = vcmp.eq.s32.totalorder %v64, %v83
    %vm187 = vcmp.eq.s32.totalorder %v64, %v87
    %vm188 = vcmp.eq.s32.totalorder %v65, %v75
    %vm189 = vcmp.eq.s32.totalorder %v65, %v79
    %vm190 = vcmp.eq.s32.totalorder %v65, %v83
    %vm191 = vcmp.eq.s32.totalorder %v65, %v87
    %vm192 = vcmp.eq.s32.totalorder %v66, %v75
    %vm193 = vcmp.eq.s32.totalorder %v66, %v79
    %vm194 = vcmp.eq.s32.totalorder %v66, %v83
    %vm195 = vcmp.eq.s32.totalorder %v66, %v87
    %vm196 = vcmp.eq.s32.totalorder %v67, %v75
    %vm197 = vcmp.eq.s32.totalorder %v67, %v79
    %vm198 = vcmp.eq.s32.totalorder %v67, %v83
    %vm199 = vcmp.eq.s32.totalorder %v67, %v87
    %vm200 = vcmp.eq.s32.totalorder %v68, %v75
    %vm201 = vcmp.eq.s32.totalorder %v68, %v79
    %vm202 = vcmp.eq.s32.totalorder %v68, %v83
    %vm203 = vcmp.eq.s32.totalorder %v68, %v87
    %vm204 = vcmp.eq.s32.totalorder %v69, %v75
    %vm205 = vcmp.eq.s32.totalorder %v69, %v79
    %vm206 = vcmp.eq.s32.totalorder %v69, %v83
    %vm207 = vcmp.eq.s32.totalorder %v69, %v87
    %vm208 = vcmp.eq.s32.totalorder %v70, %v75
    %vm209 = vcmp.eq.s32.totalorder %v70, %v79
    %vm210 = vcmp.eq.s32.totalorder %v70, %v83
    %vm211 = vcmp.eq.s32.totalorder %v70, %v87
    %vm212 = vcmp.eq.s32.totalorder %v71, %v75
    %vm213 = vcmp.eq.s32.totalorder %v71, %v79
    %vm214 = vcmp.eq.s32.totalorder %v71, %v83
    %vm215 = vcmp.eq.s32.totalorder %v71, %v87
    %v216 = vsel %vm88, 1, 0
    %v217 = vsel %vm89, 1, 0
    %v218 = vsel %vm90, 1, 0
    %v219 = vsel %vm91, 1, 0
    %v220 = vsel %vm92, 1, 0
    %v221 = vsel %vm93, 1, 0
    %v222 = vsel %vm94, 1, 0
    %v223 = vsel %vm95, 1, 0
    %v224 = vsel %vm96, 1, 0
    %v225 = vsel %vm97, 1, 0
    %v226 = vsel %vm98, 1, 0
    %v227 = vsel %vm99, 1, 0
    %v228 = vsel %vm100, 1, 0
    %v229 = vsel %vm101, 1, 0
    %v230 = vsel %vm102, 1, 0
    %v231 = vsel %vm103, 1, 0
    %v232 = vsel %vm104, 1, 0
    %v233 = vsel %vm105, 1, 0
    %v234 = vsel %vm106, 1, 0
    %v235 = vsel %vm107, 1, 0
    %v236 = vsel %vm108, 1, 0
    %v237 = vsel %vm109, 1, 0
    %v238 = vsel %vm110, 1, 0
    %v239 = vsel %vm111, 1, 0
    %v240 = vsel %vm112, 1, 0
    %v241 = vsel %vm113, 1, 0
    %v242 = vsel %vm114, 1, 0
    %v243 = vsel %vm115, 1, 0
    %v244 = vsel %vm116, 1, 0
    %v245 = vsel %vm117, 1, 0
    %v246 = vsel %vm118, 1, 0
    %v247 = vsel %vm119, 1, 0
    %v248 = vsel %vm120, 1, 0
    %v249 = vsel %vm121, 1, 0
    %v250 = vsel %vm122, 1, 0
    %v251 = vsel %vm123, 1, 0
    %v252 = vsel %vm124, 1, 0
    %v253 = vsel %vm125, 1, 0
    %v254 = vsel %vm126, 1, 0
    %v255 = vsel %vm127, 1, 0
    %v256 = vsel %vm128, 1, 0
    %v257 = vsel %vm129, 1, 0
    %v258 = vsel %vm130, 1, 0
    %v259 = vsel %vm131, 1, 0
    %v260 = vsel %vm132, 1, 0
    %v261 = vsel %vm133, 1, 0
    %v262 = vsel %vm134, 1, 0
    %v263 = vsel %vm135, 1, 0
    %v264 = vsel %vm136, 1, 0
    %v265 = vsel %vm137, 1, 0
    %v266 = vsel %vm138, 1, 0
    %v267 = vsel %vm139, 1, 0
    %v268 = vsel %vm140, 1, 0
    %v269 = vsel %vm141, 1, 0
    %v270 = vsel %vm142, 1, 0
    %v271 = vsel %vm143, 1, 0
    %v272 = vsel %vm144, 1, 0
    %v273 = vsel %vm145, 1, 0
    %v274 = vsel %vm146, 1, 0
    %v275 = vsel %vm147, 1, 0
    %v276 = vsel %vm148, 1, 0
    %v277 = vsel %vm149, 1, 0
    %v278 = vsel %vm150, 1, 0
    %v279 = vsel %vm151, 1, 0
    %v280 = vsel %vm152, 1, 0
    %v281 = vsel %vm153, 1, 0
    %v282 = vsel %vm154, 1, 0
    %v283 = vsel %vm155, 1, 0
    %v284 = vsel %vm156, 1, 0
    %v285 = vsel %vm157, 1, 0
    %v286 = vsel %vm158, 1, 0
    %v287 = vsel %vm159, 1, 0
    %v288 = vsel %vm160, 1, 0
    %v289 = vsel %vm161, 1, 0
    %v290 = vsel %vm162, 1, 0
    %v291 = vsel %vm163, 1, 0
    %v292 = vsel %vm164, 1, 0
    %v293 = vsel %vm165, 1, 0
    %v294 = vsel %vm166, 1, 0
    %v295 = vsel %vm167, 1, 0
    %v296 = vsel %vm168, 1, 0
    %v297 = vsel %vm169, 1, 0
    %v298 = vsel %vm170, 1, 0
    %v299 = vsel %vm171, 1, 0
    %v300 = vsel %vm172, 1, 0
    %v301 = vsel %vm173, 1, 0
    %v302 = vsel %vm174, 1, 0
    %v303 = vsel %vm175, 1, 0
    %v304 = vsel %vm176, 1, 0
    %v305 = vsel %vm177, 1, 0
    %v306 = vsel %vm178, 1, 0
    %v307 = vsel %vm179, 1, 0
    %v308 = vsel %vm180, 1, 0
    %v309 = vsel %vm181, 1, 0
    %v310 = vsel %vm182, 1, 0
    %v311 = vsel %vm183, 1, 0
    %v312 = vsel %vm184, 1, 0
    %v313 = vsel %vm185, 1, 0
    %v314 = vsel %vm186, 1, 0
    %v315 = vsel %vm187, 1, 0
    %v316 = vsel %vm188, 1, 0
    %v317 = vsel %vm189, 1, 0
    %v318 = vsel %vm190, 1, 0
    %v319 = vsel %vm191, 1, 0
    %v320 = vsel %vm192, 1, 0
    %v321 = vsel %vm193, 1, 0
    %v322 = vsel %vm194, 1, 0
    %v323 = vsel %vm195, 1, 0
    %v324 = vsel %vm196, 1, 0
    %v325 = vsel %vm197, 1, 0
    %v326 = vsel %vm198, 1, 0
    %v327 = vsel %vm199, 1, 0
    %v328 = vsel %vm200, 1, 0
    %v329 = vsel %vm201, 1, 0
    %v330 = vsel %vm202, 1, 0
    %v331 = vsel %vm203, 1, 0
    %v332 = vsel %vm204, 1, 0
    %v333 = vsel %vm205, 1, 0
    %v334 = vsel %vm206, 1, 0
    %v335 = vsel %vm207, 1, 0
    %v336 = vsel %vm208, 1, 0
    %v337 = vsel %vm209, 1, 0
    %v338 = vsel %vm210, 1, 0
    %v339 = vsel %vm211, 1, 0
    %v340 = vsel %vm212, 1, 0
    %v341 = vsel %vm213, 1, 0
    %v342 = vsel %vm214, 1, 0
    %v343 = vsel %vm215, 1, 0
    %v344 = vcvt.s32.f32 %v216
    %v345 = vcvt.s32.f32 %v217
    %v346 = vcvt.s32.f32 %v218
    %v347 = vcvt.s32.f32 %v219
    %v348 = vcvt.s32.f32 %v220
    %v349 = vcvt.s32.f32 %v221
    %v350 = vcvt.s32.f32 %v222
    %v351 = vcvt.s32.f32 %v223
    %v352 = vcvt.s32.f32 %v224
    %v353 = vcvt.s32.f32 %v225
    %v354 = vcvt.s32.f32 %v226
    %v355 = vcvt.s32.f32 %v227
    %v356 = vcvt.s32.f32 %v228
    %v357 = vcvt.s32.f32 %v229
    %v358 = vcvt.s32.f32 %v230
    %v359 = vcvt.s32.f32 %v231
    %v360 = vcvt.s32.f32 %v232
    %v361 = vcvt.s32.f32 %v233
    %v362 = vcvt.s32.f32 %v234
    %v363 = vcvt.s32.f32 %v235
    %v364 = vcvt.s32.f32 %v236
    %v365 = vcvt.s32.f32 %v237
    %v366 = vcvt.s32.f32 %v238
    %v367 = vcvt.s32.f32 %v239
    %v368 = vcvt.s32.f32 %v240
    %v369 = vcvt.s32.f32 %v241
    %v370 = vcvt.s32.f32 %v242
    %v371 = vcvt.s32.f32 %v243
    %v372 = vcvt.s32.f32 %v244
    %v373 = vcvt.s32.f32 %v245
    %v374 = vcvt.s32.f32 %v246
    %v375 = vcvt.s32.f32 %v247
    %v376 = vcvt.s32.f32 %v248
    %v377 = vcvt.s32.f32 %v249
    %v378 = vcvt.s32.f32 %v250
    %v379 = vcvt.s32.f32 %v251
    %v380 = vcvt.s32.f32 %v252
    %v381 = vcvt.s32.f32 %v253
    %v382 = vcvt.s32.f32 %v254
    %v383 = vcvt.s32.f32 %v255
    %v384 = vcvt.s32.f32 %v256
    %v385 = vcvt.s32.f32 %v257
    %v386 = vcvt.s32.f32 %v258
    %v387 = vcvt.s32.f32 %v259
    %v388 = vcvt.s32.f32 %v260
    %v389 = vcvt.s32.f32 %v261
    %v390 = vcvt.s32.f32 %v262
    %v391 = vcvt.s32.f32 %v263
    %v392 = vcvt.s32.f32 %v264
    %v393 = vcvt.s32.f32 %v265
    %v394 = vcvt.s32.f32 %v266
    %v395 = vcvt.s32.f32 %v267
    %v396 = vcvt.s32.f32 %v268
    %v397 = vcvt.s32.f32 %v269
    %v398 = vcvt.s32.f32 %v270
    %v399 = vcvt.s32.f32 %v271
    %v400 = vcvt.s32.f32 %v272
    %v401 = vcvt.s32.f32 %v273
    %v402 = vcvt.s32.f32 %v274
    %v403 = vcvt.s32.f32 %v275
    %v404 = vcvt.s32.f32 %v276
    %v405 = vcvt.s32.f32 %v277
    %v406 = vcvt.s32.f32 %v278
    %v407 = vcvt.s32.f32 %v279
    %v408 = vcvt.s32.f32 %v280
    %v409 = vcvt.s32.f32 %v281
    %v410 = vcvt.s32.f32 %v282
    %v411 = vcvt.s32.f32 %v283
    %v412 = vcvt.s32.f32 %v284
    %v413 = vcvt.s32.f32 %v285
    %v414 = vcvt.s32.f32 %v286
    %v415 = vcvt.s32.f32 %v287
    %v416 = vcvt.s32.f32 %v288
    %v417 = vcvt.s32.f32 %v289
    %v418 = vcvt.s32.f32 %v290
    %v419 = vcvt.s32.f32 %v291
    %v420 = vcvt.s32.f32 %v292
    %v421 = vcvt.s32.f32 %v293
    %v422 = vcvt.s32.f32 %v294
    %v423 = vcvt.s32.f32 %v295
    %v424 = vcvt.s32.f32 %v296
    %v425 = vcvt.s32.f32 %v297
    %v426 = vcvt.s32.f32 %v298
    %v427 = vcvt.s32.f32 %v299
    %v428 = vcvt.s32.f32 %v300
    %v429 = vcvt.s32.f32 %v301
    %v430 = vcvt.s32.f32 %v302
    %v431 = vcvt.s32.f32 %v303
    %v432 = vcvt.s32.f32 %v304
    %v433 = vcvt.s32.f32 %v305
    %v434 = vcvt.s32.f32 %v306
    %v435 = vcvt.s32.f32 %v307
    %v436 = vcvt.s32.f32 %v308
    %v437 = vcvt.s32.f32 %v309
    %v438 = vcvt.s32.f32 %v310
    %v439 = vcvt.s32.f32 %v311
    %v440 = vcvt.s32.f32 %v312
    %v441 = vcvt.s32.f32 %v313
    %v442 = vcvt.s32.f32 %v314
    %v443 = vcvt.s32.f32 %v315
    %v444 = vcvt.s32.f32 %v316
    %v445 = vcvt.s32.f32 %v317
    %v446 = vcvt.s32.f32 %v318
    %v447 = vcvt.s32.f32 %v319
    %v448 = vcvt.s32.f32 %v320
    %v449 = vcvt.s32.f32 %v321
    %v450 = vcvt.s32.f32 %v322
    %v451 = vcvt.s32.f32 %v323
    %v452 = vcvt.s32.f32 %v324
    %v453 = vcvt.s32.f32 %v325
    %v454 = vcvt.s32.f32 %v326
    %v455 = vcvt.s32.f32 %v327
    %v456 = vcvt.s32.f32 %v328
    %v457 = vcvt.s32.f32 %v329
    %v458 = vcvt.s32.f32 %v330
    %v459 = vcvt.s32.f32 %v331
    %v460 = vcvt.s32.f32 %v332
    %v461 = vcvt.s32.f32 %v333
    %v462 = vcvt.s32.f32 %v334
    %v463 = vcvt.s32.f32 %v335
    %v464 = vcvt.s32.f32 %v336
    %v465 = vcvt.s32.f32 %v337
    %v466 = vcvt.s32.f32 %v338
    %v467 = vcvt.s32.f32 %v339
    %v468 = vcvt.s32.f32 %v340
    %v469 = vcvt.s32.f32 %v341
    %v470 = vcvt.s32.f32 %v342
    %v471 = vcvt.s32.f32 %v343
    %v472 = vld [vmem:[#allocation5] sm:$0xff]
    %v473 = vld [vmem:[#allocation5 + $0x8] sm:$0xff]
    %v474 = vld [vmem:[#allocation5 + $0x10] sm:$0xff]
    %v475 = vld [vmem:[#allocation5 + $0x18] sm:$0xff]
    %v476 = vld [vmem:[#allocation5 + $0x20] sm:$0xff]
    %v477 = vld [vmem:[#allocation5 + $0x28] sm:$0xff]
    %v478 = vld [vmem:[#allocation5 + $0x30] sm:$0xff]
    %v479 = vld [vmem:[#allocation5 + $0x38] sm:$0xff]
    %480 = vmatprep.subr.mxu0 %v345
    %481 = vmatpush1.msra.mxu0 %v344
    %482 = vmatprep.subr.mxu0 %v349
    %483 = vmatpush1.msra.mxu0 %v348
    %484 = vmatprep.subr.mxu0 %v353
    %485 = vmatpush1.msra.mxu0 %v352
    %486 = vmatprep.subr.mxu0 %v357
    %487 = vmatpush1.msra.mxu0 %v356
    %488 = vmatprep.subr.mxu0 %v361
    %489 = vmatpush1.msra.mxu0 %v360
    %490 = vmatprep.subr.mxu0 %v365
    %491 = vmatpush1.msra.mxu0 %v364
    %492 = vmatprep.subr.mxu0 %v369
    %493 = vmatpush1.msra.mxu0 %v368
    %494 = vmatprep.subr.mxu0 %v373
    %495 = vmatpush1.msra.mxu0 %v372
    %496 = vmatprep.subr.mxu0 %v377
    %497 = vmatpush1.msra.mxu0 %v376
    %498 = vmatprep.subr.mxu0 %v381
    %499 = vmatpush1.msra.mxu0 %v380
    %500 = vmatprep.subr.mxu0 %v385
    %501 = vmatpush1.msra.mxu0 %v384
    %502 = vmatprep.subr.mxu0 %v389
    %503 = vmatpush1.msra.mxu0 %v388
    %504 = vmatprep.subr.mxu0 %v393
    %505 = vmatpush1.msra.mxu0 %v392
    %506 = vmatprep.subr.mxu0 %v397
    %507 = vmatpush1.msra.mxu0 %v396
    %508 = vmatprep.subr.mxu0 %v401
    %509 = vmatpush1.msra.mxu0 %v400
    %510 = vmatprep.subr.mxu0 %v405
    %511 = vmatpush1.msra.mxu0 %v404
    %512 = vmatprep.subr.mxu0 %v409
    %513 = vmatpush1.msra.mxu0 %v408
    %514 = vmatprep.subr.mxu0 %v413
    %515 = vmatpush1.msra.mxu0 %v412
    %516 = vmatprep.subr.mxu0 %v417
    %517 = vmatpush1.msra.mxu0 %v416
    %518 = vmatprep.subr.mxu0 %v421
    %519 = vmatpush1.msra.mxu0 %v420
    %520 = vmatprep.subr.mxu0 %v425
    %521 = vmatpush1.msra.mxu0 %v424
    %522 = vmatprep.subr.mxu0 %v429
    %523 = vmatpush1.msra.mxu0 %v428
    %524 = vmatprep.subr.mxu0 %v433
    %525 = vmatpush1.msra.mxu0 %v432
    %526 = vmatprep.subr.mxu0 %v437
    %527 = vmatpush1.msra.mxu0 %v436
    %528 = vmatprep.subr.mxu0 %v441
    %529 = vmatpush1.msra.mxu0 %v440
    %530 = vmatprep.subr.mxu0 %v445
    %531 = vmatpush1.msra.mxu0 %v444
    %532 = vmatprep.subr.mxu0 %v449
    %533 = vmatpush1.msra.mxu0 %v448
    %534 = vmatprep.subr.mxu0 %v453
    %535 = vmatpush1.msra.mxu0 %v452
    %536 = vmatprep.subr.mxu0 %v457
    %537 = vmatpush1.msra.mxu0 %v456
    %538 = vmatprep.subr.mxu0 %v461
    %539 = vmatpush1.msra.mxu0 %v460
    %540 = vmatprep.subr.mxu0 %v465
    %541 = vmatpush1.msra.mxu0 %v464
    %542 = vmatprep.subr.mxu0 %v469
    %543 = vmatpush1.msra.mxu0 %v468
    %544 = vmatprep.mubr.f32.mxu0 %v473
    %545 = vmatmul.mubr.f32.gmra.mrb[0].mxu0 %v472
    %v546 = vpop.f32.mrb[0].mxu0
    %v547 = vadd.f32 0.0, %v546
    %v548 = vpop.f32.mrb[0].mxu0
    %v549 = vadd.f32 0.0, %v548
    %550 = vmatprep.mubr.f32.mxu0 %v475
    %551 = vmatmul.mubr.f32.gmra.mrb[0].mxu0 %v474
    %v552 = vpop.f32.mrb[0].mxu0
    %v553 = vadd.f32 0.0, %v552
    %v554 = vpop.f32.mrb[0].mxu0
    %v555 = vadd.f32 0.0, %v554
    %556 = vmatprep.mubr.f32.mxu0 %v477
    %557 = vmatmul.mubr.f32.gmra.mrb[0].mxu0 %v476
    %v558 = vpop.f32.mrb[0].mxu0
    %v559 = vadd.f32 0.0, %v558
    %v560 = vpop.f32.mrb[0].mxu0
    %v561 = vadd.f32 0.0, %v560
    %562 = vmatprep.mubr.f32.mxu0 %v479
    %563 = vmatmul.mubr.f32.gmra.mrb[0].mxu0 %v478
    %v564 = vpop.f32.mrb[0].mxu0
    %v565 = vadd.f32 0.0, %v564
    %v566 = vpop.f32.mrb[0].mxu0
    %v567 = vadd.f32 0.0, %v566
    %568 = vdwg.mxu0
    %569 = vmatprep.subr.mxu0 %v347
    %570 = vmatpush1.msra.mxu0 %v346
    %571 = vmatprep.subr.mxu0 %v351
    %572 = vmatpush1.msra.mxu0 %v350
    %573 = vmatprep.subr.mxu0 %v355
    %574 = vmatpush1.msra.mxu0 %v354
    %575 = vmatprep.subr.mxu0 %v359
    %576 = vmatpush1.msra.mxu0 %v358
    %577 = vmatprep.subr.mxu0 %v363
    %578 = vmatpush1.msra.mxu0 %v362
    %579 = vmatprep.subr.mxu0 %v367
    %580 = vmatpush1.msra.mxu0 %v366
    %581 = vmatprep.subr.mxu0 %v371
    %582 = vmatpush1.msra.mxu0 %v370
    %583 = vmatprep.subr.mxu0 %v375
    %584 = vmatpush1.msra.mxu0 %v374
    %585 = vmatprep.subr.mxu0 %v379
    %586 = vmatpush1.msra.mxu0 %v378
    %587 = vmatprep.subr.mxu0 %v383
    %588 = vmatpush1.msra.mxu0 %v382
    %589 = vmatprep.subr.mxu0 %v387
    %590 = vmatpush1.msra.mxu0 %v386
    %591 = vmatprep.subr.mxu0 %v391
    %592 = vmatpush1.msra.mxu0 %v390
    %593 = vmatprep.subr.mxu0 %v395
    %594 = vmatpush1.msra.mxu0 %v394
    %595 = vmatprep.subr.mxu0 %v399
    %596 = vmatpush1.msra.mxu0 %v398
    %597 = vmatprep.subr.mxu0 %v403
    %598 = vmatpush1.msra.mxu0 %v402
    %599 = vmatprep.subr.mxu0 %v407
    %600 = vmatpush1.msra.mxu0 %v406
    %601 = vmatprep.subr.mxu0 %v411
    %602 = vmatpush1.msra.mxu0 %v410
    %603 = vmatprep.subr.mxu0 %v415
    %604 = vmatpush1.msra.mxu0 %v414
    %605 = vmatprep.subr.mxu0 %v419
    %606 = vmatpush1.msra.mxu0 %v418
    %607 = vmatprep.subr.mxu0 %v423
    %608 = vmatpush1.msra.mxu0 %v422
    %609 = vmatprep.subr.mxu0 %v427
    %610 = vmatpush1.msra.mxu0 %v426
    %611 = vmatprep.subr.mxu0 %v431
    %612 = vmatpush1.msra.mxu0 %v430
    %613 = vmatprep.subr.mxu0 %v435
    %614 = vmatpush1.msra.mxu0 %v434
    %615 = vmatprep.subr.mxu0 %v439
    %616 = vmatpush1.msra.mxu0 %v438
    %617 = vmatprep.subr.mxu0 %v443
    %618 = vmatpush1.msra.mxu0 %v442
    %619 = vmatprep.subr.mxu0 %v447
    %620 = vmatpush1.msra.mxu0 %v446
    %621 = vmatprep.subr.mxu0 %v451
    %622 = vmatpush1.msra.mxu0 %v450
    %623 = vmatprep.subr.mxu0 %v455
    %624 = vmatpush1.msra.mxu0 %v454
    %625 = vmatprep.subr.mxu0 %v459
    %626 = vmatpush1.msra.mxu0 %v458
    %627 = vmatprep.subr.mxu0 %v463
    %628 = vmatpush1.msra.mxu0 %v462
    %629 = vmatprep.subr.mxu0 %v467
    %630 = vmatpush1.msra.mxu0 %v466
    %631 = vmatprep.subr.mxu0 %v471
    %632 = vmatpush1.msra.mxu0 %v470
    %633 = vmatprep.mubr.f32.mxu0 %v473
    %634 = vmatmul.mubr.f32.gmra.mrb[0].mxu0 %v472
    %v635 = vpop.f32.mrb[0].mxu0
    %v636 = vadd.f32 0.0, %v635
    %v637 = vpop.f32.mrb[0].mxu0
    %v638 = vadd.f32 0.0, %v637
    %639 = vmatprep.mubr.f32.mxu0 %v475
    %640 = vmatmul.mubr.f32.gmra.mrb[0].mxu0 %v474
    %v641 = vpop.f32.mrb[0].mxu0
    %v642 = vadd.f32 0.0, %v641
    %v643 = vpop.f32.mrb[0].mxu0
    %v644 = vadd.f32 0.0, %v643
    %645 = vmatprep.mubr.f32.mxu0 %v477
    %646 = vmatmul.mubr.f32.gmra.mrb[0].mxu0 %v476
    %v647 = vpop.f32.mrb[0].mxu0
    %v648 = vadd.f32 0.0, %v647
    %v649 = vpop.f32.mrb[0].mxu0
    %v650 = vadd.f32 0.0, %v649
    %651 = vmatprep.mubr.f32.mxu0 %v479
    %652 = vmatmul.mubr.f32.gmra.mrb[0].mxu0 %v478
    %v653 = vpop.f32.mrb[0].mxu0
    %v654 = vadd.f32 0.0, %v653
    %v655 = vpop.f32.mrb[0].mxu0
    %v656 = vadd.f32 0.0, %v655
    %657 = vdwg.mxu0
    %658 = vst [vmem:[#allocation7] sm:$0xff] %v547
    %659 = vst [vmem:[#allocation7 + $0x8] sm:$0xff] %v549
    %660 = vst [vmem:[#allocation7 + $0x10] sm:$0xff] %v636
    %661 = vst [vmem:[#allocation7 + $0x18] sm:$0xff] %v638
    %662 = vst [vmem:[#allocation7 + $0x20] sm:$0xff] %v553
    %663 = vst [vmem:[#allocation7 + $0x28] sm:$0xff] %v555
    %664 = vst [vmem:[#allocation7 + $0x30] sm:$0xff] %v642
    %665 = vst [vmem:[#allocation7 + $0x38] sm:$0xff] %v644
    %666 = vst [vmem:[#allocation7 + $0x40] sm:$0xff] %v559
    %667 = vst [vmem:[#allocation7 + $0x48] sm:$0xff] %v561
    %668 = vst [vmem:[#allocation7 + $0x50] sm:$0xff] %v648
    %669 = vst [vmem:[#allocation7 + $0x58] sm:$0xff] %v650
    %670 = vst [vmem:[#allocation7 + $0x60] sm:$0xff] %v565
    %671 = vst [vmem:[#allocation7 + $0x68] sm:$0xff] %v567
    %672 = vst [vmem:[#allocation7 + $0x70] sm:$0xff] %v654
    %673 = vst [vmem:[#allocation7 + $0x78] sm:$0xff] %v656
    // Predicated region
    $region18: #{tpu_custom_call.1} parent=1 // pred_check
      _
    $region19: #{tpu_custom_call.1} parent=1 // pred_check_branch
      %675 = sbr.rel (0) target = $region21
    $region20: #{tpu_custom_call.1} parent=1 // pred_region
      %s677 = ssub.s32 2048, 2048
      %678 = vsyncadd [#allocation4], %s677
      %s679 = sshll.u32 [#allocation7], 4
      %s680 = int_to_ptr.vmem [resolvable:$true] %s679
      %685 = dma.vmem_to_hbm [thread:$0]  %s680, 2048, %s2, [#allocation4], 512, 512, 32
    $region21: #{tpu_custom_call.1} parent=1 // pred_fallthru
      _
    // Predicated region
    $region22: #{tpu_custom_call.1} parent=1 // pred_check
      _
    $region23: #{tpu_custom_call.1} parent=1 // pred_check_branch
      %687 = sbr.rel (0) target = $region25
    $region24: #{tpu_custom_call.1} parent=1 // pred_region
      %688 = dma.done [#allocation4], 2048
    $region25: #{tpu_custom_call.1} parent=1 // pred_fallthru
      _
    %689 = vsyncpa [#allocation3], 1
    %690 = vsyncpa [#allocation6], 1
    %691 = vsyncpa [#allocation4], 1

</llo_original>
